<compile_context>
chip_gen: v5e
topology: v5e:2x2
jax: 0.10.0
libtpu: 0.0.40
codegen_flags: <defaults>
</compile_context>

<pallas_src>
import functools
import math

import jax
import jax.numpy as jnp
from jax import lax
from jax.experimental import pallas as pl
from jax.experimental.pallas import tpu as pltpu

_LANE = 128  # vreg lane width; also the lane stride of the packed weight slab


def _round_up(n, m):
    return ((n + m - 1) // m) * m


def _choose_tile(batch, max_tile_b):
    """Pick the batch (lane) tile and number of grid steps.

    Big tiles amortise per-grid-step pipeline overhead; the tile is halved when that
    would leave a single tile so the "parallel" axis can still shard across v7x's two
    TensorCores.  Tiny batches use one full-array block (full-dim escape of the
    (8,128) block-shape rule).
    """
    if batch <= _LANE:
        return batch, 1
    tile = min(max_tile_b, _round_up(pl.cdiv(batch, 2), _LANE))
    tile = max(tile, _LANE)
    return tile, pl.cdiv(batch, tile)


def pack_params(params, compute_dtype=jnp.float32):
    """Pack the 8 tiny parameter tensors into two VMEM-resident slabs.

    Weight slab (hidden, 3*128), each matrix at its own lane-tile offset:
        [:, 0:in]            = w1 (hidden, in)
        [:, 128:128+hidden]  = w2 (hidden, hidden)
        [:out, 256:256+hidden] = w3 (out, hidden)
    Vector slab (hidden, 8) float32:
        col 0 = b1, col 1 = b2, col 2 = LN gamma, col 3 = LN beta, col 4[:out] = b3.
    """
    hidden, in_size = params["w1"].shape
    out_size = params["w3"].shape[0]

    wp = jnp.zeros((hidden, 3 * _LANE), compute_dtype)
    wp = wp.at[:, 0:in_size].set(params["w1"].astype(compute_dtype))
    wp = wp.at[:, _LANE:_LANE + hidden].set(params["w2"].astype(compute_dtype))
    wp = wp.at[:out_size, 2 * _LANE:2 * _LANE + hidden].set(
        params["w3"].astype(compute_dtype))

    vp = jnp.zeros((hidden, 8), jnp.float32)
    vp = vp.at[:, 0].set(params["b1"])
    vp = vp.at[:, 1].set(params["b2"])
    vp = vp.at[:, 2].set(params["g2"])
    vp = vp.at[:, 3].set(params["be2"])
    vp = vp.at[:out_size, 4].set(params["b3"])
    return wp, vp


def mlp_kernel(x_ref, wp_ref, vp_ref, o_ref, *, in_size, hidden, out_size,
               compute_dtype):
    cd = compute_dtype
    f32 = jnp.float32

    xb = x_ref[...].astype(cd)                      # (tile_b, in), batch-major block

    # Static slab views (loads of tiny resident blocks).
    w1 = wp_ref[:, 0:in_size]                       # (hidden, in)
    w2 = wp_ref[:, _LANE:_LANE + hidden]            # (hidden, hidden)
    w3 = wp_ref[0:out_size, 2 * _LANE:2 * _LANE + hidden]   # (out, hidden)
    vecs = vp_ref[...]                              # (hidden, 8) f32
    b1 = vecs[:, 0:1]
    b2 = vecs[:, 1:2]
    gamma = vecs[:, 2:3]
    beta = vecs[:, 3:4]
    b3 = vecs[0:out_size, 4:5]

    # ---- Layer 1: Linear + Tanh --------------------------------------------------
    # NT matmul: contract the feature (minor) dims of both operands so the result is
    # feature-major (hidden, tile_b) with the batch on the lane axis.  The MXU absorbs
    # the "transpose"; no data transpose, no extra HBM pass in the wrapper.
    nt = (((1,), (1,)), ((), ()))
    h = lax.dot_general(w1, xb, nt, preferred_element_type=f32) + b1
    h = jnp.tanh(h.astype(cd))                      # tanh + layer hand-off in cd

    # ---- Layer 2: Linear + LayerNorm(features = sublanes) + Tanh ------------------
    h = jnp.dot(w2, h, preferred_element_type=f32) + b2          # (hidden, tile_b) f32
    mean = jnp.mean(h, axis=0, keepdims=True)                    # f32 stats
    hc = h - mean
    var = jnp.mean(hc * hc, axis=0, keepdims=True)               # PyTorch-style E[(h-m)^2]
    h = hc * lax.rsqrt(var + 1e-5) * gamma + beta
    h = jnp.tanh(h.astype(cd))

    # ---- Layer 3: Linear + Tanh, then * pi ----------------------------------------
    # NOTE: garbage lanes of a ragged edge block flow through harmlessly (everything
    # is column-local) and are masked away on the output write.
    out = jnp.dot(w3, h, preferred_element_type=f32) + b3        # (out, tile_b), lane-dense
    o_ref[...] = (f32(math.pi) * jnp.tanh(out)).astype(o_ref.dtype)


def sequential_nn_forward(x, params, *, compute_dtype=jnp.float32,
                          max_tile_b=16384, batch_major_output=True):
    """Fused forward of SequentialNN(16, 3, 8, hidden=32, 'Tanh', norm=True).

    x: (B, input_size) float32, batch-major (module layout).
    Returns (B, output_size) float32 by default.  batch_major_output=False returns the
    kernel-native lane-dense (output_size, B) and skips the final transpose (saves an
    HBM pass when the consumer can take that layout).  max_tile_b is sweepable
    (8192-32768 recommended; raise vmem_limit_bytes if you go far beyond 32768).
    compute_dtype=jnp.bfloat16 is an opt-in reduced-precision fast path (v6e/v7x).
    """
    B, in_size = x.shape
    hidden = params["w1"].shape[0]
    out_size = params["w3"].shape[0]

    tile, n_tiles = _choose_tile(B, max_tile_b)
    wp, vp = pack_params(params, compute_dtype)

    cost = pl.CostEstimate(
        flops=2 * B * (in_size * hidden + hidden * hidden + hidden * out_size),
        transcendentals=B * (2 * hidden + out_size + 1),          # 3x tanh + rsqrt
        bytes_accessed=B * (in_size + out_size) * 4
        + wp.size * wp.dtype.itemsize + vp.size * 4,
    )

    kernel = functools.partial(mlp_kernel, in_size=in_size, hidden=hidden,
                               out_size=out_size, compute_dtype=compute_dtype)

    out_t = pl.pallas_call(
        kernel,
        out_shape=jax.ShapeDtypeStruct((out_size, B), jnp.float32),
        grid=(n_tiles,),
        in_specs=[
            pl.BlockSpec((tile, in_size), lambda i: (i, 0)),   # x: pipelined batch tiles
            pl.BlockSpec(wp.shape, lambda i: (0, 0)),          # weight slab: resident
            pl.BlockSpec(vp.shape, lambda i: (0, 0)),          # bias/LN slab: resident
        ],
        out_specs=pl.BlockSpec((out_size, tile), lambda i: (0, i)),
        compiler_params=pltpu.CompilerParams(
            dimension_semantics=("parallel",),
            # Above the 32 MiB default scoped limit so big tiles compile; below v7x's
            # 64 MiB physical VMEM; plenty of headroom on v5e/v6e (128 MiB).
            vmem_limit_bytes=48 * 1024 * 1024,
        ),
        cost_estimate=cost,
    )(x, wp, vp)

    if batch_major_output:
        return out_t.T                                           # (B, out_size)
    return out_t                                                 # (out_size, B), lane-dense


def init_params(key, input_size, hidden_size, output_size):
    """PyTorch nn.Linear-style U(-1/sqrt(fan_in), 1/sqrt(fan_in)) init; LN gamma=1, beta=0."""
    ks = jax.random.split(key, 6)

    def lin(kw, kb, fan_in, fan_out):
        bound = 1.0 / math.sqrt(fan_in)
        w = jax.random.uniform(kw, (fan_out, fan_in), jnp.float32, -bound, bound)
        b = jax.random.uniform(kb, (fan_out,), jnp.float32, -bound, bound)
        return w, b

    w1, b1 = lin(ks[0], ks[1], input_size, hidden_size)
    w2, b2 = lin(ks[2], ks[3], hidden_size, hidden_size)
    w3, b3 = lin(ks[4], ks[5], hidden_size, output_size)
    return {"w1": w1, "b1": b1, "w2": w2, "b2": b2,
            "g2": jnp.ones((hidden_size,), jnp.float32),
            "be2": jnp.zeros((hidden_size,), jnp.float32),
            "w3": w3, "b3": b3}


def reference_forward(x, p):
    """Pure-JAX f32 reference, exact mirror of the PyTorch forward."""
    hp = lax.Precision.HIGHEST
    h = jnp.tanh(jnp.dot(x, p["w1"].T, precision=hp) + p["b1"])
    h = jnp.dot(h, p["w2"].T, precision=hp) + p["b2"]
    mean = jnp.mean(h, axis=-1, keepdims=True)
    var = jnp.mean((h - mean) ** 2, axis=-1, keepdims=True)
    h = (h - mean) / jnp.sqrt(var + 1e-5) * p["g2"] + p["be2"]
    h = jnp.tanh(h)
    out = jnp.tanh(jnp.dot(h, p["w3"].T, precision=hp) + p["b3"])
    return math.pi * out


if __name__ == "__main__":
    input_size, hidden_size, output_size = 16, 32, 8
    key = jax.random.PRNGKey(0)
    k_x, k_x2, k_p = jax.random.split(key, 3)
    params = init_params(k_p, input_size, hidden_size, output_size)

    # Small batch consistent with the module (default f32 path == PyTorch parity).
    B = 64
    x = jax.random.normal(k_x, (B, input_size), jnp.float32)
    y = jax.block_until_ready(sequential_nn_forward(x, params))
    y_ref = reference_forward(x, params)
    assert y.shape == (B, output_size)
    assert jnp.allclose(y, y_ref, atol=1e-3, rtol=1e-3), "f32 kernel mismatch"

    # Ragged batch: exercises the pl.cdiv grid with masked edge blocks (no padding).
    B2 = 300
    x2 = jax.random.normal(k_x2, (B2, input_size), jnp.float32)
    y2 = jax.block_until_ready(sequential_nn_forward(x2, params, max_tile_b=128))
    assert y2.shape == (B2, output_size)
    assert jnp.allclose(y2, reference_forward(x2, params), atol=1e-3, rtol=1e-3), \
        "edge-block kernel mismatch"

    # Opt-in bf16 fast path (bf16 activations through MXU/EUP, f32 LN stats/accum).
    # Coarse sanity bound only; exact parity is established by the f32 checks above.
    y_bf = jax.block_until_ready(
        sequential_nn_forward(x, params, compute_dtype=jnp.bfloat16))
    assert y_bf.shape == (B, output_size)
    assert jnp.allclose(y_bf, y_ref, atol=2e-1), "bf16 fast path mismatch"

    print("KERNEL_OK")
</pallas_src>

<mosaic_0001>
module attributes {stable_mosaic.version = 11 : i64} {
  func.func @mlp_kernel(%arg0: i32, %arg1: memref<64x16xf32, #tpu.memory_space<vmem>>, %arg2: memref<32x384xf32, #tpu.memory_space<vmem>>, %arg3: memref<32x8xf32, #tpu.memory_space<vmem>>, %arg4: memref<8x64xf32, #tpu.memory_space<vmem>>) attributes {dimension_semantics = [#tpu.dimension_semantics<parallel>], iteration_bounds = array<i64: 1>, scalar_prefetch = 0 : i64, scratch_operands = 0 : i64, tpu.core_type = #tpu.core_type<tc>, window_params = [{transform_indices = @transform_0, window_bounds = array<i64: 64, 16>}, {pipeline_mode = #tpu.pipeline_mode<synchronous>, transform_indices = @transform_1, window_bounds = array<i64: 32, 384>}, {pipeline_mode = #tpu.pipeline_mode<synchronous>, transform_indices = @transform_2, window_bounds = array<i64: 32, 8>}, {transform_indices = @transform_3, window_bounds = array<i64: 8, 64>}]} {
    %c0 = arith.constant 0 : index
    %c0_0 = arith.constant 0 : index
    %0 = vector.load %arg1[%c0, %c0_0] : memref<64x16xf32, #tpu.memory_space<vmem>>, vector<64x16xf32>
    %c0_1 = arith.constant 0 : index
    %c0_2 = arith.constant 0 : index
    %1 = vector.load %arg2[%c0_1, %c0_2] : memref<32x384xf32, #tpu.memory_space<vmem>>, vector<32x16xf32>
    %c0_3 = arith.constant 0 : index
    %c128 = arith.constant 128 : index
    %2 = vector.load %arg2[%c0_3, %c128] : memref<32x384xf32, #tpu.memory_space<vmem>>, vector<32x32xf32>
    %c0_4 = arith.constant 0 : index
    %c256 = arith.constant 256 : index
    %3 = vector.load %arg2[%c0_4, %c256] : memref<32x384xf32, #tpu.memory_space<vmem>>, vector<8x32xf32>
    %c0_5 = arith.constant 0 : index
    %c0_6 = arith.constant 0 : index
    %4 = vector.load %arg3[%c0_5, %c0_6] : memref<32x8xf32, #tpu.memory_space<vmem>>, vector<32x8xf32>
    %5 = vector.extract_strided_slice %4 {offsets = [0, 0], sizes = [32, 1], strides = [1, 1]} : vector<32x8xf32> to vector<32x1xf32>
    %6 = vector.extract_strided_slice %4 {offsets = [0, 1], sizes = [32, 1], strides = [1, 1]} : vector<32x8xf32> to vector<32x1xf32>
    %7 = vector.extract_strided_slice %4 {offsets = [0, 2], sizes = [32, 1], strides = [1, 1]} : vector<32x8xf32> to vector<32x1xf32>
    %8 = vector.extract_strided_slice %4 {offsets = [0, 3], sizes = [32, 1], strides = [1, 1]} : vector<32x8xf32> to vector<32x1xf32>
    %9 = vector.extract_strided_slice %4 {offsets = [0, 4], sizes = [8, 1], strides = [1, 1]} : vector<32x8xf32> to vector<8x1xf32>
    %cst = arith.constant dense<0.000000e+00> : vector<32x64xf32>
    %10 = tpu.matmul %1, %0, %cst {dimension_numbers = #tpu.dot_dimension_numbers<[1], [1], [0], [0], [0, 0, 1, 0], [], []>} : vector<32x16xf32>, vector<64x16xf32>, vector<32x64xf32> -> vector<32x64xf32>
    %11 = vector.broadcast %5 : vector<32x1xf32> to vector<32x64xf32>
    %12 = arith.addf %10, %11 : vector<32x64xf32>
    %13 = math.tanh %12 : vector<32x64xf32>
    %cst_7 = arith.constant dense<0.000000e+00> : vector<32x64xf32>
    %14 = tpu.matmul %2, %13, %cst_7 {dimension_numbers = #tpu.dot_dimension_numbers<[1], [0], [0], [1], [0, 0, 1, 1], [], []>} : vector<32x32xf32>, vector<32x64xf32>, vector<32x64xf32> -> vector<32x64xf32>
    %15 = vector.broadcast %6 : vector<32x1xf32> to vector<32x64xf32>
    %16 = arith.addf %14, %15 : vector<32x64xf32>
    %cst_8 = arith.constant dense<0.000000e+00> : vector<64xf32>
    %17 = vector.multi_reduction <add>, %16, %cst_8 [0] : vector<32x64xf32> to vector<64xf32>
    %18 = vector.shape_cast %17 : vector<64xf32> to vector<1x64xf32>
    %cst_9 = arith.constant 3.200000e+01 : f32
    %19 = vector.broadcast %cst_9 : f32 to vector<1x64xf32>
    %20 = arith.divf %18, %19 : vector<1x64xf32>
    %21 = vector.broadcast %20 : vector<1x64xf32> to vector<32x64xf32>
    %22 = arith.subf %16, %21 : vector<32x64xf32>
    %23 = arith.mulf %22, %22 : vector<32x64xf32>
    %cst_10 = arith.constant dense<0.000000e+00> : vector<64xf32>
    %24 = vector.multi_reduction <add>, %23, %cst_10 [0] : vector<32x64xf32> to vector<64xf32>
    %25 = vector.shape_cast %24 : vector<64xf32> to vector<1x64xf32>
    %cst_11 = arith.constant 3.200000e+01 : f32
    %26 = vector.broadcast %cst_11 : f32 to vector<1x64xf32>
    %27 = arith.divf %25, %26 : vector<1x64xf32>
    %cst_12 = arith.constant 9.99999974E-6 : f32
    %28 = vector.broadcast %cst_12 : f32 to vector<1x64xf32>
    %29 = arith.addf %27, %28 : vector<1x64xf32>
    %30 = math.rsqrt %29 : vector<1x64xf32>
    %31 = vector.broadcast %30 : vector<1x64xf32> to vector<32x64xf32>
    %32 = arith.mulf %22, %31 : vector<32x64xf32>
    %33 = vector.broadcast %7 : vector<32x1xf32> to vector<32x64xf32>
    %34 = arith.mulf %32, %33 : vector<32x64xf32>
    %35 = vector.broadcast %8 : vector<32x1xf32> to vector<32x64xf32>
    %36 = arith.addf %34, %35 : vector<32x64xf32>
    %37 = math.tanh %36 : vector<32x64xf32>
    %cst_13 = arith.constant dense<0.000000e+00> : vector<8x64xf32>
    %38 = tpu.matmul %3, %37, %cst_13 {dimension_numbers = #tpu.dot_dimension_numbers<[1], [0], [0], [1], [0, 0, 1, 1], [], []>} : vector<8x32xf32>, vector<32x64xf32>, vector<8x64xf32> -> vector<8x64xf32>
    %39 = vector.broadcast %9 : vector<8x1xf32> to vector<8x64xf32>
    %40 = arith.addf %38, %39 : vector<8x64xf32>
    %41 = math.tanh %40 : vector<8x64xf32>
    %cst_14 = arith.constant 3.14159274 : f32
    %42 = vector.broadcast %cst_14 : f32 to vector<8x64xf32>
    %43 = arith.mulf %42, %41 : vector<8x64xf32>
    %c0_15 = arith.constant 0 : index
    %c0_16 = arith.constant 0 : index
    %44 = vector.load %arg4[%c0_15, %c0_16] : memref<8x64xf32, #tpu.memory_space<vmem>>, vector<8x64xf32>
    tpu.vector_store %arg4[%c0_15, %c0_16], %43 {strides = array<i32>} : memref<8x64xf32, #tpu.memory_space<vmem>>, vector<8x64xf32>,
    return
  }
  func.func @transform_0(%arg0: i32) -> (i32, i32) {
    %c0_i32 = arith.constant 0 : i32
    %c0_i32_0 = arith.constant 0 : i32
    return %arg0, %c0_i32 : i32, i32
  }
  func.func @transform_1(%arg0: i32) -> (i32, i32) {
    %c0_i32 = arith.constant 0 : i32
    %c0_i32_0 = arith.constant 0 : i32
    %c0_i32_1 = arith.constant 0 : i32
    return %c0_i32, %c0_i32_0 : i32, i32
  }
  func.func @transform_2(%arg0: i32) -> (i32, i32) {
    %c0_i32 = arith.constant 0 : i32
    %c0_i32_0 = arith.constant 0 : i32
    %c0_i32_1 = arith.constant 0 : i32
    return %c0_i32, %c0_i32_0 : i32, i32
  }
  func.func @transform_3(%arg0: i32) -> (i32, i32) {
    %c0_i32 = arith.constant 0 : i32
    %c0_i32_0 = arith.constant 0 : i32
    return %c0_i32, %arg0 : i32, i32
  }
}

</mosaic_0001>

<llo_original>
// kernel: tpu_custom_call.1
$region0: #{tpu_custom_call.1}
  #allocation0 [shape = 'u32[]', space=smem, size = 0x4, offset = 0x4, fixed_abs, tag = 'smem constant byte address 0x4 - core index']
  #allocation1 [shape = 'u32[72,128]{1,0:T(1,128)}', space=vmem, size = 0x9000, scoped, tag = 'internal scratch']
  %s0 = inlined_call_operand.vmem [shape: f32[64,16], index: 0, kind: input, shape index: {}]
  %s1 = inlined_call_operand.vmem [shape: f32[32,384], index: 1, kind: input, shape index: {}]
  %s2 = inlined_call_operand.vmem [shape: f32[32,8], index: 2, kind: input, shape index: {}]
  %s3 = inlined_call_operand.hbm [shape: f32[8,64], index: 3, kind: output, shape index: {}]
  %s4 = sld [smem:[#allocation0]]
  $region22: #{tpu_custom_call.1} parent=0
    _
  %s6 = ssub.s32 1, %s4
  %s7 = scalar_select 0, %s6, %s4
  $region1: #{tpu_custom_call.1} parent=0
    #allocation2 [shape = 'u8[4096]{0}', space=vmem, size = 0x1000, scoped, tag = 'output window, operand 0, single buffered']
    #allocation3 [shape = 's32[1]{0}', space=sflag, size = 0x4, scoped, tag = 'scoped memory for tpu_custom_call.1']
    %8 = vsyncpa [#allocation3], 0
    // Predicated region
    $region2: #{tpu_custom_call.1} parent=1 // pred_check
      _
    $region3: #{tpu_custom_call.1} parent=1 // pred_check_branch
      %10 = sbr.rel (0) target = $region5
    $region4: #{tpu_custom_call.1} parent=1 // pred_region
      _
    $region5: #{tpu_custom_call.1} parent=1 // pred_fallthru
      _
    // Predicated region
    $region6: #{tpu_custom_call.1} parent=1 // pred_check
      _
    $region7: #{tpu_custom_call.1} parent=1 // pred_check_branch
      %12 = sbr.rel (0) target = $region9
    $region8: #{tpu_custom_call.1} parent=1 // pred_region
      _
    $region9: #{tpu_custom_call.1} parent=1 // pred_fallthru
      _
    // Predicated region
    $region10: #{tpu_custom_call.1} parent=1 // pred_check
      _
    $region11: #{tpu_custom_call.1} parent=1 // pred_check_branch
      %14 = sbr.rel (0) target = $region13
    $region12: #{tpu_custom_call.1} parent=1 // pred_region
      _
    $region13: #{tpu_custom_call.1} parent=1 // pred_fallthru
      _
    %v15 = vld [vmem:[%s0] sm:$0xff]
    %v16 = vld [vmem:[%s0 + $0x8] sm:$0xff]
    %v17 = vld [vmem:[%s0 + $0x10] sm:$0xff]
    %v18 = vld [vmem:[%s0 + $0x18] sm:$0xff]
    %v19 = vld [vmem:[%s0 + $0x20] sm:$0xff]
    %v20 = vld [vmem:[%s0 + $0x28] sm:$0xff]
    %v21 = vld [vmem:[%s0 + $0x30] sm:$0xff]
    %v22 = vld [vmem:[%s0 + $0x38] sm:$0xff]
    %v23 = vld [vmem:[%s1] sm:$0xff]
    %v24 = vld [vmem:[%s1 + $0x18] sm:$0xff]
    %v25 = vld [vmem:[%s1 + $0x30] sm:$0xff]
    %v26 = vld [vmem:[%s1 + $0x48] sm:$0xff]
    %v27 = vld [vmem:[%s1 + $0x8] sm:$0xff]
    %v28 = vld [vmem:[%s1 + $0x20] sm:$0xff]
    %v29 = vld [vmem:[%s1 + $0x38] sm:$0xff]
    %v30 = vld [vmem:[%s1 + $0x50] sm:$0xff]
    %v31 = vld [vmem:[%s1 + $0x10] sm:$0xff]
    %v32 = vld [vmem:[%s2] sm:$0xff]
    %v33 = vld [vmem:[%s2 + $0x8] sm:$0xff]
    %v34 = vld [vmem:[%s2 + $0x10] sm:$0xff]
    %v35 = vld [vmem:[%s2 + $0x18] sm:$0xff]
    %37 = vset.pattern.permute.xlu0 0
    %38 = vperm.xlu0 %37, %v32
    %v39 = vpop.permute.xlu0 %38
    %42 = vset.pattern.permute.xlu0 0
    %43 = vperm.xlu0 %42, %v33
    %v44 = vpop.permute.xlu0 %43
    %47 = vset.pattern.permute.xlu0 0
    %48 = vperm.xlu0 %47, %v34
    %v49 = vpop.permute.xlu0 %48
    %52 = vset.pattern.permute.xlu0 0
    %53 = vperm.xlu0 %52, %v35
    %v54 = vpop.permute.xlu0 %53
    %vm56 = vcmask 130048
    %v58 = vsel %vm56, %v23, 0
    %v61 = vsel %vm56, %v24, 0
    %v64 = vsel %vm56, %v25, 0
    %v67 = vsel %vm56, %v26, 0
    %v70 = vsel %vm56, %v15, 0
    %v73 = vsel %vm56, %v16, 0
    %v76 = vsel %vm56, %v17, 0
    %v79 = vsel %vm56, %v18, 0
    %v82 = vsel %vm56, %v19, 0
    %v85 = vsel %vm56, %v20, 0
    %v88 = vsel %vm56, %v21, 0
    %v91 = vsel %vm56, %v22, 0
    %93 = vmatpush.xpose.msra.mxu0 0.0
    %94 = vmatpush.xpose.msra.mxu0 0.0
    %95 = vmatpush.xpose.msra.mxu0 0.0
    %96 = vmatpush.xpose.msra.mxu0 0.0
    %97 = vmatpush.xpose.msra.mxu0 0.0
    %98 = vmatpush.xpose.msra.mxu0 0.0
    %99 = vmatpush.xpose.msra.mxu0 0.0
    %100 = vmatpush.xpose.msra.mxu0 0.0
    %101 = vmatpush.xpose.msra.mxu0 %v91
    %102 = vmatpush.xpose.msra.mxu0 %v88
    %103 = vmatpush.xpose.msra.mxu0 %v85
    %104 = vmatpush.xpose.msra.mxu0 %v82
    %105 = vmatpush.xpose.msra.mxu0 %v79
    %106 = vmatpush.xpose.msra.mxu0 %v76
    %107 = vmatpush.xpose.msra.mxu0 %v73
    %108 = vmatpush.xpose.msra.mxu0 %v70
    %109 = vmatmul.f32.gmra.mxu0 %v58
    %v110 = vpop.f32.mrf.mxu0
    %v111 = vadd.f32 %v39, %v110
    %112 = vmatmul.f32.gmra.mxu0 %v61
    %v113 = vpop.f32.mrf.mxu0
    %v114 = vadd.f32 %v44, %v113
    %115 = vmatmul.f32.gmra.mxu0 %v64
    %v116 = vpop.f32.mrf.mxu0
    %v117 = vadd.f32 %v49, %v116
    %118 = vmatmul.f32.gmra.mxu0 %v67
    %v119 = vpop.f32.mrf.mxu0
    %v120 = vadd.f32 %v54, %v119
    %121 = vdwg.mxu0
    %v122 = vtanh.pop %v111
    %v123 = vtanh.pop %v114
    %v124 = vtanh.pop %v117
    %v125 = vtanh.pop %v120
    %126 = vset.pattern.permute.xlu0 1
    %127 = vperm.xlu0 %126, %v32
    %v128 = vpop.permute.xlu0 %127
    %130 = vset.pattern.permute.xlu0 1
    %131 = vperm.xlu0 %130, %v33
    %v132 = vpop.permute.xlu0 %131
    %134 = vset.pattern.permute.xlu0 1
    %135 = vperm.xlu0 %134, %v34
    %v136 = vpop.permute.xlu0 %135
    %138 = vset.pattern.permute.xlu0 1
    %139 = vperm.xlu0 %138, %v35
    %v140 = vpop.permute.xlu0 %139
    %vm142 = vcmask 261120
    %v144 = vsel %vm142, %v27, 0
    %v147 = vsel %vm142, %v28, 0
    %v150 = vsel %vm142, %v29, 0
    %v153 = vsel %vm142, %v30, 0
    %155 = vmatpush.msra.mxu0 0.0
    %156 = vmatpush.msra.mxu0 0.0
    %157 = vmatpush.msra.mxu0 0.0
    %158 = vmatpush.msra.mxu0 0.0
    %159 = vmatpush.msra.mxu0 0.0
    %160 = vmatpush.msra.mxu0 0.0
    %161 = vmatpush.msra.mxu0 0.0
    %162 = vmatpush.msra.mxu0 0.0
    %163 = vmatpush.msra.mxu0 0.0
    %164 = vmatpush.msra.mxu0 0.0
    %165 = vmatpush.msra.mxu0 0.0
    %166 = vmatpush.msra.mxu0 0.0
    %167 = vmatpush.msra.mxu0 %v125
    %168 = vmatpush.msra.mxu0 %v124
    %169 = vmatpush.msra.mxu0 %v123
    %170 = vmatpush.msra.mxu0 %v122
    %171 = vmatmul.f32.gmra.mxu0 %v144
    %v172 = vpop.f32.mrf.mxu0
    %v173 = vadd.f32 %v128, %v172
    %174 = vmatmul.f32.gmra.mxu0 %v147
    %v175 = vpop.f32.mrf.mxu0
    %v176 = vadd.f32 %v132, %v175
    %177 = vmatmul.f32.gmra.mxu0 %v150
    %v178 = vpop.f32.mrf.mxu0
    %v179 = vadd.f32 %v136, %v178
    %180 = vmatmul.f32.gmra.mxu0 %v153
    %v181 = vpop.f32.mrf.mxu0
    %v182 = vadd.f32 %v140, %v181
    %183 = vdwg.mxu0
    %vm184 = vcmask 523264
    %v185 = vsel %vm184, %v173, 0.0
    %v186 = vsel %vm184, %v176, 0.0
    %v187 = vadd.f32 %v185, %v186
    %v188 = vsel %vm184, %v179, 0.0
    %v189 = vadd.f32 %v187, %v188
    %v190 = vsel %vm184, %v182, 0.0
    %v191 = vadd.f32 %v189, %v190
    %v192 = vrot.slane %v191, 4
    %v193 = vadd.f32 %v191, %v192
    %v194 = vrot.slane %v193, 2
    %v195 = vadd.f32 %v193, %v194
    %v196 = vrot.slane %v195, 1
    %v197 = vadd.f32 %v195, %v196
    %v198 = vrcp.pop 32.0
    %v199 = vmul.f32 32.0, %v198
    %v200 = vsub.f32 1.0, %v199
    %v201 = vmul.f32 %v198, %v200
    %v202 = vadd.f32 %v198, %v201
    %vm203 = vweird.f32 %v198
    %v204 = vsel %vm203, %v198, %v202
    %v205 = vmul.f32 %v197, %v204
    %v206 = vsub.f32 %v173, %v205
    %v207 = vsub.f32 %v176, %v205
    %v208 = vsub.f32 %v179, %v205
    %v209 = vsub.f32 %v182, %v205
    %v210 = vmul.f32 %v206, %v206
    %v211 = vmul.f32 %v207, %v207
    %v212 = vmul.f32 %v208, %v208
    %v213 = vmul.f32 %v209, %v209
    %v214 = vsel %vm184, %v210, 0.0
    %v215 = vsel %vm184, %v211, 0.0
    %v216 = vadd.f32 %v214, %v215
    %v217 = vsel %vm184, %v212, 0.0
    %v218 = vadd.f32 %v216, %v217
    %v219 = vsel %vm184, %v213, 0.0
    %v220 = vadd.f32 %v218, %v219
    %v221 = vrot.slane %v220, 4
    %v222 = vadd.f32 %v220, %v221
    %v223 = vrot.slane %v222, 2
    %v224 = vadd.f32 %v222, %v223
    %v225 = vrot.slane %v224, 1
    %v226 = vadd.f32 %v224, %v225
    %v227 = vmul.f32 %v226, %v204
    %v228 = vadd.f32 %v227, 1e-05
    %v229 = vrsqrt.pop %v228
    %v230 = vmul.f32 %v229, %v228
    %v231 = vmul.f32 %v230, %v229
    %v232 = vmul.f32 0.5, %v231
    %v233 = vsub.f32 1.5, %v232
    %v234 = vmul.f32 %v229, %v233
    %vm235 = vweird.f32 %v228
    %vm236 = vweird.f32 %v229
    %vm237 = vmor %vm235, %vm236
    %v238 = vsel %vm237, %v229, %v234
    %v239 = vmul.f32 %v206, %v238
    %v240 = vmul.f32 %v207, %v238
    %v241 = vmul.f32 %v208, %v238
    %v242 = vmul.f32 %v209, %v238
    %243 = vset.pattern.permute.xlu0 2
    %244 = vperm.xlu0 %243, %v32
    %v245 = vpop.permute.xlu0 %244
    %247 = vset.pattern.permute.xlu0 2
    %248 = vperm.xlu0 %247, %v33
    %v249 = vpop.permute.xlu0 %248
    %251 = vset.pattern.permute.xlu0 2
    %252 = vperm.xlu0 %251, %v34
    %v253 = vpop.permute.xlu0 %252
    %255 = vset.pattern.permute.xlu0 2
    %256 = vperm.xlu0 %255, %v35
    %v257 = vpop.permute.xlu0 %256
    %v259 = vmul.f32 %v239, %v245
    %v260 = vmul.f32 %v240, %v249
    %v261 = vmul.f32 %v241, %v253
    %v262 = vmul.f32 %v242, %v257
    %263 = vset.pattern.permute.xlu0 3
    %264 = vperm.xlu0 %263, %v32
    %v265 = vpop.permute.xlu0 %264
    %267 = vset.pattern.permute.xlu0 3
    %268 = vperm.xlu0 %267, %v33
    %v269 = vpop.permute.xlu0 %268
    %271 = vset.pattern.permute.xlu0 3
    %272 = vperm.xlu0 %271, %v34
    %v273 = vpop.permute.xlu0 %272
    %275 = vset.pattern.permute.xlu0 3
    %276 = vperm.xlu0 %275, %v35
    %v277 = vpop.permute.xlu0 %276
    %v279 = vadd.f32 %v259, %v265
    %v280 = vadd.f32 %v260, %v269
    %v281 = vadd.f32 %v261, %v273
    %v282 = vadd.f32 %v262, %v277
    %v283 = vtanh.pop %v279
    %v284 = vtanh.pop %v280
    %v285 = vtanh.pop %v281
    %v286 = vtanh.pop %v282
    %287 = vset.pattern.permute.xlu0 4
    %288 = vperm.xlu0 %287, %v32
    %v289 = vpop.permute.xlu0 %288
    %v292 = vsel %vm142, %v31, 0
    %294 = vmatpush.msra.mxu0 0.0
    %295 = vmatpush.msra.mxu0 0.0
    %296 = vmatpush.msra.mxu0 0.0
    %297 = vmatpush.msra.mxu0 0.0
    %298 = vmatpush.msra.mxu0 0.0
    %299 = vmatpush.msra.mxu0 0.0
    %300 = vmatpush.msra.mxu0 0.0
    %301 = vmatpush.msra.mxu0 0.0
    %302 = vmatpush.msra.mxu0 0.0
    %303 = vmatpush.msra.mxu0 0.0
    %304 = vmatpush.msra.mxu0 0.0
    %305 = vmatpush.msra.mxu0 0.0
    %306 = vmatpush.msra.mxu0 %v286
    %307 = vmatpush.msra.mxu0 %v285
    %308 = vmatpush.msra.mxu0 %v284
    %309 = vmatpush.msra.mxu0 %v283
    %310 = vmatmul.f32.gmra.mxu0 %v292
    %v311 = vpop.f32.mrf.mxu0
    %v312 = vadd.f32 %v289, %v311
    %313 = vdwg.mxu0
    %v314 = vtanh.pop %v312
    %v315 = vmul.f32 %v314, 3.1415927
    %316 = vst.msk [vmem:[#allocation2] sm:$0xff] %vm184, %v315
    // Predicated region
    $region14: #{tpu_custom_call.1} parent=1 // pred_check
      _
    $region15: #{tpu_custom_call.1} parent=1 // pred_check_branch
      %318 = sbr.rel (0) target = $region17
    $region16: #{tpu_custom_call.1} parent=1 // pred_region
      %320 = vsyncadd [#allocation3], 0
      %s322 = sshll.u32 [#allocation2], 4
      %s323 = int_to_ptr.vmem [resolvable:$true] %s322
      %s324 = sshll.u32 %s3, 4
      %s325 = int_to_ptr.hbm [resolvable:$true] %s324
      %327 = dma.vmem_to_hbm [thread:$0]  %s323, 128, %s325, [#allocation3]
    $region17: #{tpu_custom_call.1} parent=1 // pred_fallthru
      _
    // Predicated region
    $region18: #{tpu_custom_call.1} parent=1 // pred_check
      _
    $region19: #{tpu_custom_call.1} parent=1 // pred_check_branch
      %329 = sbr.rel (0) target = $region21
    $region20: #{tpu_custom_call.1} parent=1 // pred_region
      %331 = dma.done [#allocation3], 128
    $region21: #{tpu_custom_call.1} parent=1 // pred_fallthru
      _
    %332 = vsyncpa [#allocation3], 1

</llo_original>
